<compile_context>
chip_gen: v5e
topology: v5e:2x2
jax: 0.10.0
libtpu: 0.0.40
codegen_flags: <defaults>
</compile_context>

<pallas_src>
import jax
import jax.numpy as jnp
from jax.experimental import pallas as pl
from jax.experimental.pallas import tpu as pltpu

_LANE = 128


def _sequential_components_kernel(x_ref, o_ref):
    """Empty nn.Sequential == identity: pass the VMEM-resident tile through.

    A concrete BaseTorchModel subclass would insert its component compute
    here (elementwise / matmul on the tile) between load and store.
    """
    o_ref[...] = x_ref[...]


def _vmem_budget():
    """(per-buffer tile byte cap, scoped vmem_limit_bytes), generation-aware."""
    try:
        vmem_cap = pltpu.get_tpu_info().vmem_capacity_bytes
    except Exception:
        vmem_cap = 64 * 1024 * 1024  # conservative (v7x-sized) default
    if vmem_cap >= 128 * 1024 * 1024:          # v5e / v6e: 128 MiB physical
        return 8 * 1024 * 1024, 64 * 1024 * 1024
    return 4 * 1024 * 1024, 32 * 1024 * 1024   # v7x: 64 MiB physical


def _sublane_rows(dtype) -> int:
    """Packed sublane count: 8 for 32-bit, 16 for 16-bit, 32 for 8-bit dtypes."""
    itemsize = jnp.dtype(dtype).itemsize
    return max(8, 8 * (4 // max(1, itemsize)))


def _pick_lane_dense_cols(n: int, itemsize: int, sublane: int, tile_cap: int):
    """Largest multiple-of-128 column count dividing n that still leaves room
    for at least one sublane-aligned row tile inside the tile byte cap."""
    max_cols = tile_cap // (sublane * itemsize)
    max_cols = min(max_cols, n)
    max_cols = (max_cols // _LANE) * _LANE
    for cols in range(max_cols, 0, -_LANE):
        if n % cols == 0:
            return cols
    return None


def _pick_tile_rows(rows: int, cols: int, itemsize: int, sublane: int,
                    tile_cap: int) -> int:
    """Largest sublane-aligned row tile under the byte cap, preferring an
    exact divisor of rows so the final block is never ragged."""
    max_rows = max(1, tile_cap // (cols * itemsize))
    if rows <= max_rows:
        return rows  # whole slab fits in a single block
    max_rows = max(sublane, (max_rows // sublane) * sublane)
    for tr in range(max_rows, sublane - 1, -sublane):
        if rows % tr == 0:
            return tr
    return max_rows  # ragged last block as a last resort


def _tiled_identity_copy(x2: jnp.ndarray) -> jnp.ndarray:
    """HBM-bandwidth-bound lane-dense copy (the subclass compute hook)."""
    rows, cols = x2.shape
    itemsize = jnp.dtype(x2.dtype).itemsize
    tile_cap, vmem_limit = _vmem_budget()
    sublane = _sublane_rows(x2.dtype)

    tile_rows = _pick_tile_rows(rows, cols, itemsize, sublane, tile_cap)
    num_steps = pl.cdiv(rows, tile_rows)
    block = (tile_rows, cols)

    def _row_map(i):
        return (i, 0)

    return pl.pallas_call(
        _sequential_components_kernel,
        out_shape=jax.ShapeDtypeStruct((rows, cols), x2.dtype),
        grid_spec=pltpu.PrefetchScalarGridSpec(
            num_scalar_prefetch=0,
            grid=(num_steps,),
            in_specs=[pl.BlockSpec(block, _row_map)],   # default double-buffering
            out_specs=pl.BlockSpec(block, _row_map),
        ),
        # Identity: output may alias the input buffer (zero-copy when donated).
        # Safe here because every step's in/out block indices are identical.
        input_output_aliases={0: 0},
        cost_estimate=pl.CostEstimate(
            flops=0,
            transcendentals=0,
            bytes_accessed=2 * rows * cols * itemsize,
        ),
        compiler_params=pltpu.CompilerParams(
            dimension_semantics=("parallel",),   # shards across v7x's 2 TCs
            vmem_limit_bytes=vmem_limit,
        ),
    )(x2)


def components_forward(x: jnp.ndarray) -> jnp.ndarray:
    """Run x through the component stack on-device (Pallas subclass hook)."""
    orig_shape = x.shape
    n = x.size
    itemsize = jnp.dtype(x.dtype).itemsize
    tile_cap, _ = _vmem_budget()
    sublane = _sublane_rows(x.dtype)

    cols = _pick_lane_dense_cols(n, itemsize, sublane, tile_cap)
    if cols is not None:
        y2 = _tiled_identity_copy(x.reshape(n // cols, cols))
        return y2.reshape(orig_shape)

    # n not a multiple of 128: peel a lane-dense main slab through the tiled
    # kernel and handle the tiny (<128-element) tail in plain JAX, so we never
    # map an arbitrarily large array into VMEM in one shot.
    main_n = (n // _LANE) * _LANE
    if main_n == 0:
        return x  # tiny input: nothing lane-dense to copy
    x_flat = x.reshape(n)
    cols = _pick_lane_dense_cols(main_n, itemsize, sublane, tile_cap)
    main = _tiled_identity_copy(x_flat[:main_n].reshape(main_n // cols, cols))
    y_flat = jnp.concatenate([main.reshape(main_n), x_flat[main_n:]])
    return y_flat.reshape(orig_shape)


def base_model_forward(x: jnp.ndarray, *, components_empty: bool = True) -> jnp.ndarray:
    """BaseTorchModel.forward: x -> self.components(x).

    BaseTorchModel only ever constructs an EMPTY nn.Sequential, which is the
    identity map — the fast path returns x with no kernel launch and no HBM
    traffic.  The Pallas kernel path (components_empty=False) is the device
    compute hook a concrete subclass would populate.
    """
    if components_empty:
        return x
    return components_forward(x)


if __name__ == "__main__":
    key = jax.random.PRNGKey(0)
    # Small NCHW input consistent with a conv-style BaseTorchModel subclass.
    x = jax.random.normal(key, (2, 4, 16, 16), dtype=jnp.float32)

    # Fast path: empty component stack -> identity with zero kernel launches.
    y_fast = jax.block_until_ready(base_model_forward(x))
    assert y_fast.shape == x.shape and y_fast.dtype == x.dtype
    assert bool(jnp.all(y_fast == x))

    # Kernel path (subclass compute hook): must also be an exact identity.
    y_kernel = jax.block_until_ready(base_model_forward(x, components_empty=False))
    assert y_kernel.shape == x.shape and y_kernel.dtype == x.dtype
    assert bool(jnp.all(y_kernel == x))

    print("KERNEL_OK")
</pallas_src>

<mosaic_0001>
module attributes {stable_mosaic.version = 11 : i64} {
  func.func @_sequential_components_kernel(%arg0: i32, %arg1: memref<1x2048xf32, #tpu.memory_space<vmem>>, %arg2: memref<1x2048xf32, #tpu.memory_space<vmem>>) attributes {dimension_semantics = [#tpu.dimension_semantics<parallel>], iteration_bounds = array<i64: 1>, scalar_prefetch = 0 : i64, scratch_operands = 0 : i64, tpu.core_type = #tpu.core_type<tc>, window_params = [{transform_indices = @transform_0, window_bounds = array<i64: 1, 2048>}, {transform_indices = @transform_1, window_bounds = array<i64: 1, 2048>}]} {
    %c0 = arith.constant 0 : index
    %c0_0 = arith.constant 0 : index
    %0 = vector.load %arg1[%c0, %c0_0] : memref<1x2048xf32, #tpu.memory_space<vmem>>, vector<1x2048xf32>
    %c0_1 = arith.constant 0 : index
    %c0_2 = arith.constant 0 : index
    %1 = vector.load %arg2[%c0_1, %c0_2] : memref<1x2048xf32, #tpu.memory_space<vmem>>, vector<1x2048xf32>
    tpu.vector_store %arg2[%c0_1, %c0_2], %0 {strides = array<i32>} : memref<1x2048xf32, #tpu.memory_space<vmem>>, vector<1x2048xf32>,
    return
  }
  func.func @transform_0(%arg0: i32) -> (i32, i32) {
    %c0_i32 = arith.constant 0 : i32
    %c0_i32_0 = arith.constant 0 : i32
    return %arg0, %c0_i32 : i32, i32
  }
  func.func @transform_1(%arg0: i32) -> (i32, i32) {
    %c0_i32 = arith.constant 0 : i32
    %c0_i32_0 = arith.constant 0 : i32
    return %arg0, %c0_i32 : i32, i32
  }
}

</mosaic_0001>

<llo_original>
// kernel: tpu_custom_call.1
$region0: #{tpu_custom_call.1}
  #allocation0 [shape = 'u32[]', space=smem, size = 0x4, offset = 0x4, fixed_abs, tag = 'smem constant byte address 0x4 - core index']
  #allocation1 [shape = 'u32[72,128]{1,0:T(1,128)}', space=vmem, size = 0x9000, scoped, tag = 'internal scratch']
  %s0 = inlined_call_operand.hbm [shape: f32[1,2048], index: 0, kind: input, shape index: {}, may-alias: {0,1}]
  %s1 = inlined_call_operand.hbm [shape: f32[1,2048], index: 1, kind: output, shape index: {}, may-alias: {0,1}]
  %s2 = sld [smem:[#allocation0]]
  $region18: #{tpu_custom_call.1} parent=0
    _
  %s4 = ssub.s32 1, %s2
  %s5 = scalar_select 0, %s4, %s2
  $region1: #{tpu_custom_call.1} parent=0
    #allocation2 [shape = 'u8[8192]{0}', space=vmem, size = 0x2000, scoped, tag = 'input window, operand 0, single buffered']
    #allocation3 [shape = 's32[1]{0}', space=sflag, size = 0x4, scoped, tag = 'scoped memory for tpu_custom_call.1']
    #allocation4 [shape = 's32[1]{0}', space=sflag, size = 0x4, scoped, tag = 'scoped memory for tpu_custom_call.1']
    #allocation5 [shape = 'u8[8192]{0}', space=vmem, size = 0x2000, scoped, tag = 'output window, operand 0, single buffered']
    %6 = vsyncpa [#allocation3], 0
    %7 = vsyncpa [#allocation4], 0
    // Predicated region
    $region2: #{tpu_custom_call.1} parent=1 // pred_check
      _
    $region3: #{tpu_custom_call.1} parent=1 // pred_check_branch
      %9 = sbr.rel (0) target = $region5
    $region4: #{tpu_custom_call.1} parent=1 // pred_region
      %11 = vsyncadd [#allocation3], 0
      %s13 = sshll.u32 %s0, 4
      %s14 = int_to_ptr.hbm [resolvable:$true] %s13
      %s15 = sshll.u32 [#allocation2], 4
      %s16 = int_to_ptr.vmem [resolvable:$true] %s15
      %18 = dma.hbm_to_vmem [thread:$0]  %s14, 256, %s16, [#allocation3]
    $region5: #{tpu_custom_call.1} parent=1 // pred_fallthru
      _
    // Predicated region
    $region6: #{tpu_custom_call.1} parent=1 // pred_check
      _
    $region7: #{tpu_custom_call.1} parent=1 // pred_check_branch
      %20 = sbr.rel (0) target = $region9
    $region8: #{tpu_custom_call.1} parent=1 // pred_region
      %22 = dma.done [#allocation3], 256
    $region9: #{tpu_custom_call.1} parent=1 // pred_fallthru
      _
    %v23 = vld [vmem:[#allocation2] sm:$0xff]
    %v24 = vld [vmem:[#allocation2 + $0x8] sm:$0xff]
    %25 = vst [vmem:[#allocation5] sm:$0xff] %v23
    %26 = vst [vmem:[#allocation5 + $0x8] sm:$0xff] %v24
    // Predicated region
    $region10: #{tpu_custom_call.1} parent=1 // pred_check
      _
    $region11: #{tpu_custom_call.1} parent=1 // pred_check_branch
      %28 = sbr.rel (0) target = $region13
    $region12: #{tpu_custom_call.1} parent=1 // pred_region
      %30 = vsyncadd [#allocation4], 0
      %s32 = sshll.u32 [#allocation5], 4
      %s33 = int_to_ptr.vmem [resolvable:$true] %s32
      %s34 = sshll.u32 %s1, 4
      %s35 = int_to_ptr.hbm [resolvable:$true] %s34
      %37 = dma.vmem_to_hbm [thread:$0]  %s33, 256, %s35, [#allocation4]
    $region13: #{tpu_custom_call.1} parent=1 // pred_fallthru
      _
    // Predicated region
    $region14: #{tpu_custom_call.1} parent=1 // pred_check
      _
    $region15: #{tpu_custom_call.1} parent=1 // pred_check_branch
      %39 = sbr.rel (0) target = $region17
    $region16: #{tpu_custom_call.1} parent=1 // pred_region
      %41 = dma.done [#allocation4], 256
    $region17: #{tpu_custom_call.1} parent=1 // pred_fallthru
      _
    %42 = vsyncpa [#allocation3], 1
    %43 = vsyncpa [#allocation4], 1

</llo_original>
